<compile_context>
chip_gen: v7x
topology: tpu7x:2x2x1
jax: 0.10.0
libtpu: 0.0.40
codegen_flags: <defaults>
</compile_context>

<pallas_src>
import jax
import jax.numpy as jnp
from jax.experimental import pallas as pl
from jax.experimental.pallas import tpu as pltpu

_LANE = 128


def _round_up(n: int, m: int) -> int:
    return ((n + m - 1) // m) * m


def _silu(z):
    # Exact SiLU: z * sigmoid(z) == z / (1 + exp(-z)).  exp goes to the EUP; the
    # divide is exact (no approx reciprocal — accuracy is free here).
    return z / (1.0 + jnp.exp(-z))


def _cond_mlp_kernel(
    x_ref,      # (TB, 2*dim_in + 1)  = [x_t | x_cond | log_t]   (compute dtype)
    w1_ref,     # (2*dim_in + 1, H_pad)                          (compute dtype)
    b1_ref,     # (1, H_pad)                                     f32
    w2_ref,     # (H_pad, H_pad)                                 (compute dtype)
    b2_ref,     # (1, H_pad)                                     f32
    w3_ref,     # (H_pad, O_pad)                                 (compute dtype)
    b3_ref,     # (1, O_pad)                                     f32
    out_ref,    # (TB, O_pad)                                    f32 (lane-dense)
):
    cdt = w1_ref.dtype  # MXU compute dtype (bf16 by default)

    # Layer 1: full concat (log_t folded in by the wrapper) — one GEMM.
    z1 = jnp.dot(x_ref[...], w1_ref[...], preferred_element_type=jnp.float32)
    a1 = _silu(z1 + b1_ref[...])

    z2 = jnp.dot(a1.astype(cdt), w2_ref[...], preferred_element_type=jnp.float32)
    a2 = _silu(z2 + b2_ref[...])

    # Lane-dense (O_pad multiple of 128) output -> unmasked full-width stores.
    out_ref[...] = (
        jnp.dot(a2.astype(cdt), w3_ref[...], preferred_element_type=jnp.float32)
        + b3_ref[...]
    ).astype(out_ref.dtype)


def cond_mlp_pallas(x_t, t, x_cond, params, *, compute_dtype=jnp.bfloat16,
                    block_b=None):
    """Pallas forward for _CondMLP.

    x_t, x_cond: (B, dim_in) float32
    t:           (B,)        float (or int -> cast)
    params: dict with W1 (2*dim_in+1, H), b1 (H,), W2 (H, H), b2 (H,),
            W3 (H, dim_in), b3 (dim_in,)   [weights stored as (in, out)]
    """
    B, dim_in = x_t.shape
    W1, b1 = params["W1"], params["b1"]
    W2, b2 = params["W2"], params["b2"]
    W3, b3 = params["W3"], params["b3"]
    H = W1.shape[1]
    K1 = 2 * dim_in + 1
    assert W1.shape[0] == K1

    # Lane-dense padded feature dims (zero-padding is exact: SiLU(0) = 0).
    H_pad = _round_up(H, _LANE)
    O_pad = _round_up(dim_in, _LANE)

    # Fused first-layer LHS: exactly the PyTorch concat, log_t as last column.
    log_t = jnp.log(t.astype(jnp.float32) + 1e-5)[:, None]
    x = jnp.concatenate(
        [x_t.astype(jnp.float32), x_cond.astype(jnp.float32), log_t], axis=1
    ).astype(compute_dtype)

    pad2 = lambda a, r, c: jnp.pad(
        a, ((0, r - a.shape[0]), (0, c - a.shape[1])))
    W1p = pad2(W1.astype(jnp.float32), K1, H_pad).astype(compute_dtype)
    W2p = pad2(W2.astype(jnp.float32), H_pad, H_pad).astype(compute_dtype)
    W3p = pad2(W3.astype(jnp.float32), H_pad, O_pad).astype(compute_dtype)
    b1p = pad2(b1.reshape(1, -1).astype(jnp.float32), 1, H_pad)
    b2p = pad2(b2.reshape(1, -1).astype(jnp.float32), 1, H_pad)
    b3p = pad2(b3.reshape(1, -1).astype(jnp.float32), 1, O_pad)

    # ---- batch block: as few grid steps as the VMEM budget allows ----------
    act_bytes = jnp.dtype(compute_dtype).itemsize
    per_row_bytes = (
        2 * K1 * act_bytes      # double-buffered input tile
        + 2 * O_pad * 4         # double-buffered f32 output tile
        + 3 * H_pad * 4         # transient f32 hidden activations
    )
    act_budget = 16 * 1024 * 1024   # activation budget; safe even on v7x (64 MiB)
    auto_bb = min(4096, max(8, act_budget // per_row_bytes))
    bb = auto_bb if block_b is None else int(block_b)
    if bb >= B:
        bb = B                                   # whole batch in one grid step
    else:
        align = 16 if act_bytes == 2 else 8      # sublane packing for bf16
        bb = max(align, (bb // align) * align)
    n_steps = pl.cdiv(B, bb)

    # Megacore-split only when each core gets a meaningful number of rows;
    # on v7x a tiny "parallel" grid just duplicates weight DMAs on both cores.
    semantics = ("parallel",) if (n_steps >= 2 and bb >= 256) else ("arbitrary",)

    act_spec = lambda w: pl.BlockSpec((bb, w), lambda i: (i, 0))
    const_spec = lambda s: pl.BlockSpec(s, lambda i: (0, 0))
    # TODO(synk): if hidden grows toward 1024+, mark the constant weight specs
    # single-buffered (pipeline_mode=pl.Buffered(1)) to halve VMEM residency on
    # v7x; at H<=128 the second copy is negligible.

    out = pl.pallas_call(
        _cond_mlp_kernel,
        out_shape=jax.ShapeDtypeStruct((B, O_pad), jnp.float32),
        grid=(n_steps,),
        in_specs=[
            act_spec(K1),                 # x = [x_t | x_cond | log_t]
            const_spec((K1, H_pad)),      # W1 (VMEM-resident across steps)
            const_spec((1, H_pad)),       # b1
            const_spec((H_pad, H_pad)),   # W2
            const_spec((1, H_pad)),       # b2
            const_spec((H_pad, O_pad)),   # W3
            const_spec((1, O_pad)),       # b3
        ],
        out_specs=act_spec(O_pad),
        compiler_params=pltpu.CompilerParams(
            dimension_semantics=semantics,
            vmem_limit_bytes=32 * 1024 * 1024,
        ),
    )(x, W1p, b1p, W2p, b2p, W3p, b3p)

    return out[:, :dim_in]


def cond_mlp_ref(x_t, t, x_cond, params):
    """Pure-JAX reference mirroring the PyTorch forward exactly (f32)."""
    log_t = jnp.log(t.astype(jnp.float32) + 1e-5)[:, None]
    h = jnp.concatenate([x_t, x_cond, log_t], axis=1)
    z1 = h @ params["W1"] + params["b1"]
    a1 = jax.nn.silu(z1)
    z2 = a1 @ params["W2"] + params["b2"]
    a2 = jax.nn.silu(z2)
    return a2 @ params["W3"] + params["b3"]


def init_params(key, dim_in, hidden):
    """Deterministic synthetic parameters (nn.Linear shapes, stored as (in, out))."""
    d_in1 = 2 * dim_in + 1
    ks = jax.random.split(key, 6)
    scale = lambda fan_in: 1.0 / jnp.sqrt(fan_in)
    return {
        "W1": jax.random.uniform(ks[0], (d_in1, hidden), jnp.float32, -scale(d_in1), scale(d_in1)),
        "b1": jax.random.uniform(ks[1], (hidden,), jnp.float32, -scale(d_in1), scale(d_in1)),
        "W2": jax.random.uniform(ks[2], (hidden, hidden), jnp.float32, -scale(hidden), scale(hidden)),
        "b2": jax.random.uniform(ks[3], (hidden,), jnp.float32, -scale(hidden), scale(hidden)),
        "W3": jax.random.uniform(ks[4], (hidden, dim_in), jnp.float32, -scale(hidden), scale(hidden)),
        "b3": jax.random.uniform(ks[5], (dim_in,), jnp.float32, -scale(hidden), scale(hidden)),
    }


if __name__ == "__main__":
    dim_in, hidden = 16, 32

    key = jax.random.PRNGKey(0)
    k_p, k_x, k_c, k_t = jax.random.split(key, 4)
    params = init_params(k_p, dim_in, hidden)

    B = 128
    x_t = jax.random.normal(k_x, (B, dim_in), jnp.float32)
    x_cond = jax.random.normal(k_c, (B, dim_in), jnp.float32)
    t = jax.random.uniform(k_t, (B,), jnp.float32, 0.0, 1.0)

    ref = cond_mlp_ref(x_t, t, x_cond, params)

    # 1) Default path: whole batch in ONE lane-dense grid step, bf16 MXU dots.
    out = jax.block_until_ready(cond_mlp_pallas(x_t, t, x_cond, params))
    assert out.shape == (B, dim_in)
    assert jnp.allclose(out, ref, atol=3e-2, rtol=3e-2), "mismatch (bf16, 1 step)"

    # 2) Forced multi-step tiling (exercises the pipelined batch-block path).
    out2 = jax.block_until_ready(
        cond_mlp_pallas(x_t, t, x_cond, params, block_b=64))
    assert jnp.allclose(out2, ref, atol=3e-2, rtol=3e-2), "mismatch (bf16, tiled)"

    # 3) Tiny deployment-shaped batch, f32 compute.  SiLU is now exact; the
    #    remaining tolerance only covers MXU matmul precision across TPU gens.
    Bs = 8
    out_s = jax.block_until_ready(
        cond_mlp_pallas(x_t[:Bs], t[:Bs], x_cond[:Bs], params,
                        compute_dtype=jnp.float32))
    assert jnp.allclose(out_s, ref[:Bs], atol=1e-2, rtol=1e-2), "mismatch (f32, tiny)"

    print("KERNEL_OK")
</pallas_src>

<mosaic_0001>
module attributes {stable_mosaic.version = 11 : i64} {
  func.func @_cond_mlp_kernel(%arg0: i32, %arg1: memref<128x33xbf16, #tpu.memory_space<vmem>>, %arg2: memref<33x128xbf16, #tpu.memory_space<vmem>>, %arg3: memref<1x128xf32, #tpu.memory_space<vmem>>, %arg4: memref<128x128xbf16, #tpu.memory_space<vmem>>, %arg5: memref<1x128xf32, #tpu.memory_space<vmem>>, %arg6: memref<128x128xbf16, #tpu.memory_space<vmem>>, %arg7: memref<1x128xf32, #tpu.memory_space<vmem>>, %arg8: memref<128x128xf32, #tpu.memory_space<vmem>>) attributes {dimension_semantics = [#tpu.dimension_semantics<arbitrary>], iteration_bounds = array<i64: 1>, scalar_prefetch = 0 : i64, scratch_operands = 0 : i64, tpu.core_type = #tpu.core_type<tc>, window_params = [{transform_indices = @transform_0, window_bounds = array<i64: 128, 33>}, {pipeline_mode = #tpu.pipeline_mode<synchronous>, transform_indices = @transform_1, window_bounds = array<i64: 33, 128>}, {pipeline_mode = #tpu.pipeline_mode<synchronous>, transform_indices = @transform_2, window_bounds = array<i64: 1, 128>}, {pipeline_mode = #tpu.pipeline_mode<synchronous>, transform_indices = @transform_3, window_bounds = array<i64: 128, 128>}, {pipeline_mode = #tpu.pipeline_mode<synchronous>, transform_indices = @transform_4, window_bounds = array<i64: 1, 128>}, {pipeline_mode = #tpu.pipeline_mode<synchronous>, transform_indices = @transform_5, window_bounds = array<i64: 128, 128>}, {pipeline_mode = #tpu.pipeline_mode<synchronous>, transform_indices = @transform_6, window_bounds = array<i64: 1, 128>}, {transform_indices = @transform_7, window_bounds = array<i64: 128, 128>}]} {
    %c0 = arith.constant 0 : index
    %c0_0 = arith.constant 0 : index
    %0 = vector.load %arg1[%c0, %c0_0] : memref<128x33xbf16, #tpu.memory_space<vmem>>, vector<128x33xbf16>
    %c0_1 = arith.constant 0 : index
    %c0_2 = arith.constant 0 : index
    %1 = vector.load %arg2[%c0_1, %c0_2] : memref<33x128xbf16, #tpu.memory_space<vmem>>, vector<33x128xbf16>
    %cst = arith.constant dense<0.000000e+00> : vector<128x128xf32>
    %2 = tpu.matmul %0, %1, %cst {dimension_numbers = #tpu.dot_dimension_numbers<[1], [0], [0], [1], [0, 0, 1, 1], [], []>} : vector<128x33xbf16>, vector<33x128xbf16>, vector<128x128xf32> -> vector<128x128xf32>
    %c0_3 = arith.constant 0 : index
    %c0_4 = arith.constant 0 : index
    %3 = vector.load %arg3[%c0_3, %c0_4] : memref<1x128xf32, #tpu.memory_space<vmem>>, vector<1x128xf32>
    %4 = vector.broadcast %3 : vector<1x128xf32> to vector<128x128xf32>
    %5 = arith.addf %2, %4 : vector<128x128xf32>
    %cst_5 = arith.constant 0.000000e+00 : f32
    %6 = vector.broadcast %cst_5 : f32 to vector<128x128xf32>
    %7 = arith.subf %6, %5 : vector<128x128xf32>
    %8 = math.exp %7 : vector<128x128xf32>
    %cst_6 = arith.constant 1.000000e+00 : f32
    %9 = vector.broadcast %cst_6 : f32 to vector<128x128xf32>
    %10 = arith.addf %9, %8 : vector<128x128xf32>
    %11 = arith.divf %5, %10 : vector<128x128xf32>
    %12 = arith.truncf %11 : vector<128x128xf32> to vector<128x128xbf16>
    %c0_7 = arith.constant 0 : index
    %c0_8 = arith.constant 0 : index
    %13 = vector.load %arg4[%c0_7, %c0_8] : memref<128x128xbf16, #tpu.memory_space<vmem>>, vector<128x128xbf16>
    %cst_9 = arith.constant dense<0.000000e+00> : vector<128x128xf32>
    %14 = tpu.matmul %12, %13, %cst_9 {dimension_numbers = #tpu.dot_dimension_numbers<[1], [0], [0], [1], [0, 0, 1, 1], [], []>} : vector<128x128xbf16>, vector<128x128xbf16>, vector<128x128xf32> -> vector<128x128xf32>
    %c0_10 = arith.constant 0 : index
    %c0_11 = arith.constant 0 : index
    %15 = vector.load %arg5[%c0_10, %c0_11] : memref<1x128xf32, #tpu.memory_space<vmem>>, vector<1x128xf32>
    %16 = vector.broadcast %15 : vector<1x128xf32> to vector<128x128xf32>
    %17 = arith.addf %14, %16 : vector<128x128xf32>
    %cst_12 = arith.constant 0.000000e+00 : f32
    %18 = vector.broadcast %cst_12 : f32 to vector<128x128xf32>
    %19 = arith.subf %18, %17 : vector<128x128xf32>
    %20 = math.exp %19 : vector<128x128xf32>
    %cst_13 = arith.constant 1.000000e+00 : f32
    %21 = vector.broadcast %cst_13 : f32 to vector<128x128xf32>
    %22 = arith.addf %21, %20 : vector<128x128xf32>
    %23 = arith.divf %17, %22 : vector<128x128xf32>
    %24 = arith.truncf %23 : vector<128x128xf32> to vector<128x128xbf16>
    %c0_14 = arith.constant 0 : index
    %c0_15 = arith.constant 0 : index
    %25 = vector.load %arg6[%c0_14, %c0_15] : memref<128x128xbf16, #tpu.memory_space<vmem>>, vector<128x128xbf16>
    %cst_16 = arith.constant dense<0.000000e+00> : vector<128x128xf32>
    %26 = tpu.matmul %24, %25, %cst_16 {dimension_numbers = #tpu.dot_dimension_numbers<[1], [0], [0], [1], [0, 0, 1, 1], [], []>} : vector<128x128xbf16>, vector<128x128xbf16>, vector<128x128xf32> -> vector<128x128xf32>
    %c0_17 = arith.constant 0 : index
    %c0_18 = arith.constant 0 : index
    %27 = vector.load %arg7[%c0_17, %c0_18] : memref<1x128xf32, #tpu.memory_space<vmem>>, vector<1x128xf32>
    %28 = vector.broadcast %27 : vector<1x128xf32> to vector<128x128xf32>
    %29 = arith.addf %26, %28 : vector<128x128xf32>
    %c0_19 = arith.constant 0 : index
    %c0_20 = arith.constant 0 : index
    %30 = vector.load %arg8[%c0_19, %c0_20] : memref<128x128xf32, #tpu.memory_space<vmem>>, vector<128x128xf32>
    tpu.vector_store %arg8[%c0_19, %c0_20], %29 {strides = array<i32>} : memref<128x128xf32, #tpu.memory_space<vmem>>, vector<128x128xf32>,
    return
  }
  func.func @transform_0(%arg0: i32) -> (i32, i32) {
    %c0_i32 = arith.constant 0 : i32
    %c0_i32_0 = arith.constant 0 : i32
    return %arg0, %c0_i32 : i32, i32
  }
  func.func @transform_1(%arg0: i32) -> (i32, i32) {
    %c0_i32 = arith.constant 0 : i32
    %c0_i32_0 = arith.constant 0 : i32
    %c0_i32_1 = arith.constant 0 : i32
    return %c0_i32, %c0_i32_0 : i32, i32
  }
  func.func @transform_2(%arg0: i32) -> (i32, i32) {
    %c0_i32 = arith.constant 0 : i32
    %c0_i32_0 = arith.constant 0 : i32
    %c0_i32_1 = arith.constant 0 : i32
    return %c0_i32, %c0_i32_0 : i32, i32
  }
  func.func @transform_3(%arg0: i32) -> (i32, i32) {
    %c0_i32 = arith.constant 0 : i32
    %c0_i32_0 = arith.constant 0 : i32
    %c0_i32_1 = arith.constant 0 : i32
    return %c0_i32, %c0_i32_0 : i32, i32
  }
  func.func @transform_4(%arg0: i32) -> (i32, i32) {
    %c0_i32 = arith.constant 0 : i32
    %c0_i32_0 = arith.constant 0 : i32
    %c0_i32_1 = arith.constant 0 : i32
    return %c0_i32, %c0_i32_0 : i32, i32
  }
  func.func @transform_5(%arg0: i32) -> (i32, i32) {
    %c0_i32 = arith.constant 0 : i32
    %c0_i32_0 = arith.constant 0 : i32
    %c0_i32_1 = arith.constant 0 : i32
    return %c0_i32, %c0_i32_0 : i32, i32
  }
  func.func @transform_6(%arg0: i32) -> (i32, i32) {
    %c0_i32 = arith.constant 0 : i32
    %c0_i32_0 = arith.constant 0 : i32
    %c0_i32_1 = arith.constant 0 : i32
    return %c0_i32, %c0_i32_0 : i32, i32
  }
  func.func @transform_7(%arg0: i32) -> (i32, i32) {
    %c0_i32 = arith.constant 0 : i32
    %c0_i32_0 = arith.constant 0 : i32
    return %arg0, %c0_i32 : i32, i32
  }
}

</mosaic_0001>

<llo_original>
// kernel: tpu_custom_call.1
$region0: #{tpu_custom_call.1}
  #allocation0 [shape = 'u32[]', space=smem, size = 0x4, offset = 0x4, fixed_abs, tag = 'smem constant byte address 0x4 - core index']
  #allocation1 [shape = 'u32[144,128]{1,0:T(1,128)}', space=vmem, size = 0x12000, scoped, tag = 'internal scratch']
  %s0 = inlined_call_operand.vmem [shape: bf16[128,33], index: 0, kind: input, shape index: {}]
  %s1 = inlined_call_operand.vmem [shape: bf16[33,128], index: 1, kind: input, shape index: {}]
  %s2 = inlined_call_operand.vmem [shape: f32[1,128], index: 2, kind: input, shape index: {}]
  %s3 = inlined_call_operand.vmem [shape: bf16[128,128], index: 3, kind: input, shape index: {}]
  %s4 = inlined_call_operand.vmem [shape: f32[1,128], index: 4, kind: input, shape index: {}]
  %s5 = inlined_call_operand.hbm [shape: bf16[128,128], index: 5, kind: input, shape index: {}]
  %s6 = inlined_call_operand.vmem [shape: f32[1,128], index: 6, kind: input, shape index: {}]
  %s7 = inlined_call_operand.hbm [shape: f32[128,128], index: 7, kind: output, shape index: {}]
  %s8 = sld [smem:[#allocation0]]
  $region42: #{tpu_custom_call.1} parent=0
    _
  %s10 = ssub.s32 1, %s8
  %s11 = scalar_select 0, %s10, %s8
  $region1: #{tpu_custom_call.1} parent=0
    #allocation2 [shape = 'u8[32768]{0}', space=vmem, size = 0x8000, scoped, tag = 'input window, operand 5, single buffered']
    #allocation3 [shape = 's32[1]{0}', space=sflag, size = 0x4, scoped, tag = 'scoped memory for tpu_custom_call.1']
    #allocation4 [shape = 's32[1]{0}', space=sflag, size = 0x4, scoped, tag = 'scoped memory for tpu_custom_call.1']
    #allocation5 [shape = 'u8[65536]{0}', space=vmem, size = 0x10000, scoped, tag = 'output window, operand 0, single buffered']
    %12 = vsyncpa [#allocation3], 0
    %13 = vsyncpa [#allocation4], 0
    // Predicated region
    $region2: #{tpu_custom_call.1} parent=1 // pred_check
      _
    $region3: #{tpu_custom_call.1} parent=1 // pred_check_branch
      %15 = sbr.rel (0) target = $region5
    $region4: #{tpu_custom_call.1} parent=1 // pred_region
      _
    $region5: #{tpu_custom_call.1} parent=1 // pred_fallthru
      _
    // Predicated region
    $region6: #{tpu_custom_call.1} parent=1 // pred_check
      _
    $region7: #{tpu_custom_call.1} parent=1 // pred_check_branch
      %17 = sbr.rel (0) target = $region9
    $region8: #{tpu_custom_call.1} parent=1 // pred_region
      _
    $region9: #{tpu_custom_call.1} parent=1 // pred_fallthru
      _
    // Predicated region
    $region10: #{tpu_custom_call.1} parent=1 // pred_check
      _
    $region11: #{tpu_custom_call.1} parent=1 // pred_check_branch
      %19 = sbr.rel (0) target = $region13
    $region12: #{tpu_custom_call.1} parent=1 // pred_region
      _
    $region13: #{tpu_custom_call.1} parent=1 // pred_fallthru
      _
    // Predicated region
    $region14: #{tpu_custom_call.1} parent=1 // pred_check
      _
    $region15: #{tpu_custom_call.1} parent=1 // pred_check_branch
      %21 = sbr.rel (0) target = $region17
    $region16: #{tpu_custom_call.1} parent=1 // pred_region
      _
    $region17: #{tpu_custom_call.1} parent=1 // pred_fallthru
      _
    // Predicated region
    $region18: #{tpu_custom_call.1} parent=1 // pred_check
      _
    $region19: #{tpu_custom_call.1} parent=1 // pred_check_branch
      %23 = sbr.rel (0) target = $region21
    $region20: #{tpu_custom_call.1} parent=1 // pred_region
      _
    $region21: #{tpu_custom_call.1} parent=1 // pred_fallthru
      _
    // Predicated region
    $region22: #{tpu_custom_call.1} parent=1 // pred_check
      _
    $region23: #{tpu_custom_call.1} parent=1 // pred_check_branch
      %25 = sbr.rel (0) target = $region25
    $region24: #{tpu_custom_call.1} parent=1 // pred_region
      %s27 = ssub.s32 1024, 1024
      %28 = vsyncadd [#allocation3], %s27
      %s29 = sshll.u32 [#allocation2], 4
      %s30 = int_to_ptr.vmem [resolvable:$true] %s29
      %35 = dma.hbm_to_vmem [thread:$0]  %s5, 1024, %s30, [#allocation3], 64, 64, 4
    $region25: #{tpu_custom_call.1} parent=1 // pred_fallthru
      _
    // Predicated region
    $region26: #{tpu_custom_call.1} parent=1 // pred_check
      _
    $region27: #{tpu_custom_call.1} parent=1 // pred_check_branch
      %37 = sbr.rel (0) target = $region29
    $region28: #{tpu_custom_call.1} parent=1 // pred_region
      _
    $region29: #{tpu_custom_call.1} parent=1 // pred_fallthru
      _
    // Predicated region
    $region30: #{tpu_custom_call.1} parent=1 // pred_check
      _
    $region31: #{tpu_custom_call.1} parent=1 // pred_check_branch
      %39 = sbr.rel (0) target = $region33
    $region32: #{tpu_custom_call.1} parent=1 // pred_region
      %40 = dma.done [#allocation3], 1024
    $region33: #{tpu_custom_call.1} parent=1 // pred_fallthru
      _
    %v42 = vld [vmem:[%s0] sm:$0xf]
    %v43 = vld [vmem:[%s0 + $0x4] sm:$0xf]
    %v44 = vld [vmem:[%s0 + $0x8] sm:$0xf]
    %v45 = vld [vmem:[%s0 + $0xc] sm:$0xf]
    %v46 = vld [vmem:[%s0 + $0x10] sm:$0xf]
    %v47 = vld [vmem:[%s0 + $0x14] sm:$0xf]
    %v48 = vld [vmem:[%s0 + $0x18] sm:$0xf]
    %v49 = vld [vmem:[%s0 + $0x1c] sm:$0xf]
    %v50 = vld [vmem:[%s0 + $0x20] sm:$0xf]
    %v51 = vld [vmem:[%s0 + $0x24] sm:$0xf]
    %v52 = vld [vmem:[%s0 + $0x28] sm:$0xf]
    %v53 = vld [vmem:[%s0 + $0x2c] sm:$0xf]
    %v54 = vld [vmem:[%s0 + $0x30] sm:$0xf]
    %v55 = vld [vmem:[%s0 + $0x34] sm:$0xf]
    %v56 = vld [vmem:[%s0 + $0x38] sm:$0xf]
    %v57 = vld [vmem:[%s0 + $0x3c] sm:$0xf]
    %v58 = vld [vmem:[%s1] sm:$0xf]
    %v59 = vld [vmem:[%s1 + $0x4] sm:$0xf]
    %v60 = vld [vmem:[%s1 + $0x8] sm:$0xf]
    %v61 = vld [vmem:[%s1 + $0xc] sm:$0xf]
    %v62 = vld [vmem:[%s1 + $0x10] sm:$0x1]
    %v63 = vld [vmem:[%s2] sm:$0x1]
    %v65 = vlaneseq
    %v66 = vshrl.u32 %v65, 7
    %v67 = vsub.s32 0, %v66
    %v68 = vrot.slane %v63, %v67
    %v86 = vunpack.c.l.b16 %v42
    %v87 = vunpack.c.l.b16 %v43
    %v88 = vunpack.c.l.b16 %v44
    %v89 = vunpack.c.l.b16 %v45
    %v90 = vunpack.c.l.b16 %v46
    %v91 = vunpack.c.l.b16 %v47
    %v92 = vunpack.c.l.b16 %v48
    %v93 = vunpack.c.l.b16 %v49
    %v94 = vunpack.c.l.b16 %v50
    %v95 = vunpack.c.l.b16 %v51
    %v96 = vunpack.c.l.b16 %v52
    %v97 = vunpack.c.l.b16 %v53
    %v98 = vunpack.c.l.b16 %v54
    %v99 = vunpack.c.l.b16 %v55
    %v100 = vunpack.c.l.b16 %v56
    %v101 = vunpack.c.l.b16 %v57
    %v102 = vpack.c.b16 %v87, %v86
    %v103 = vpack.c.b16 %v89, %v88
    %v104 = vpack.c.b16 %v91, %v90
    %v105 = vpack.c.b16 %v93, %v92
    %v106 = vpack.c.b16 %v95, %v94
    %v107 = vpack.c.b16 %v97, %v96
    %v108 = vpack.c.b16 %v99, %v98
    %v109 = vpack.c.b16 %v101, %v100
    %v115 = vunpack.c.l.b16 %v58
    %v116 = vunpack.c.l.b16 %v59
    %v117 = vunpack.c.l.b16 %v60
    %v118 = vunpack.c.l.b16 %v61
    %v119 = vunpack.c.l.b16 %v62
    %v120 = vpack.c.b16 %v116, %v115
    %v121 = vpack.c.b16 %v118, %v117
    %v122 = vpack.c.b16 %v119, %v119
    %vm125 = vcmask 269312
    %v127 = vsel %vm125, %v102, 0
    %v130 = vsel %vm125, %v103, 0
    %v133 = vsel %vm125, %v104, 0
    %v136 = vsel %vm125, %v105, 0
    %v139 = vsel %vm125, %v106, 0
    %v142 = vsel %vm125, %v107, 0
    %v145 = vsel %vm125, %v108, 0
    %v148 = vsel %vm125, %v109, 0
    %vm150 = vcmask 1040384
    %v151 = vsel 0, 4294967295, 65535
    %v152 = vsel %vm150, %v151, 0
    %v154 = vand.u32 %v122, %v152
    %156 = vmatprep.subr.bf16.mxu0 0
    %157 = vmatpush1.bf16.msra.mxu0 %v120
    %158 = vmatprep.subr.bf16.mxu0 0
    %159 = vmatpush1.bf16.msra.mxu0 %v121
    %160 = vmatprep.subr.bf16.mxu0 0
    %161 = vmatpush1.bf16.msra.mxu0 %v154
    %162 = vmatprep.subr.bf16.mxu0 0
    %163 = vmatpush1.bf16.msra.mxu0 0
    %164 = vmatprep.subr.bf16.mxu0 0
    %165 = vmatpush1.bf16.msra.mxu0 0
    %166 = vmatprep.subr.bf16.mxu0 0
    %167 = vmatpush1.bf16.msra.mxu0 0
    %168 = vmatprep.subr.bf16.mxu0 0
    %169 = vmatpush1.bf16.msra.mxu0 0
    %170 = vmatprep.subr.bf16.mxu0 0
    %171 = vmatpush1.bf16.msra.mxu0 0
    %172 = vmatprep.subr.bf16.mxu0 0
    %173 = vmatpush1.bf16.msra.mxu0 0
    %174 = vmatprep.subr.bf16.mxu0 0
    %175 = vmatpush1.bf16.msra.mxu0 0
    %176 = vmatprep.subr.bf16.mxu0 0
    %177 = vmatpush1.bf16.msra.mxu0 0
    %178 = vmatprep.subr.bf16.mxu0 0
    %179 = vmatpush1.bf16.msra.mxu0 0
    %180 = vmatprep.subr.bf16.mxu0 0
    %181 = vmatpush1.bf16.msra.mxu0 0
    %182 = vmatprep.subr.bf16.mxu0 0
    %183 = vmatpush1.bf16.msra.mxu0 0
    %184 = vmatprep.subr.bf16.mxu0 0
    %185 = vmatpush1.bf16.msra.mxu0 0
    %186 = vmatprep.subr.bf16.mxu0 0
    %187 = vmatpush1.bf16.msra.mxu0 0
    %188 = vmatprep.mubr.bf16.mxu0 0
    %189 = vmatmul.mubr.bf16.gmra.mrb[0].mxu0 %v127
    %v190 = vpop.f32.mrb[0].mxu0
    %v191 = vadd.f32 %v68, %v190
    %v192 = vpop.f32.mrb[0].mxu0
    %v193 = vpop.f32.mrb[0].mxu0
    %v194 = vadd.f32 %v68, %v193
    %v195 = vpop.f32.mrb[0].mxu0
    %196 = vmatprep.mubr.bf16.mxu0 0
    %197 = vmatmul.mubr.bf16.gmra.mrb[0].mxu0 %v130
    %v198 = vpop.f32.mrb[0].mxu0
    %v199 = vadd.f32 %v68, %v198
    %v200 = vpop.f32.mrb[0].mxu0
    %v201 = vpop.f32.mrb[0].mxu0
    %v202 = vadd.f32 %v68, %v201
    %v203 = vpop.f32.mrb[0].mxu0
    %204 = vmatprep.mubr.bf16.mxu0 0
    %205 = vmatmul.mubr.bf16.gmra.mrb[0].mxu0 %v133
    %v206 = vpop.f32.mrb[0].mxu0
    %v207 = vadd.f32 %v68, %v206
    %v208 = vpop.f32.mrb[0].mxu0
    %v209 = vpop.f32.mrb[0].mxu0
    %v210 = vadd.f32 %v68, %v209
    %v211 = vpop.f32.mrb[0].mxu0
    %212 = vmatprep.mubr.bf16.mxu0 0
    %213 = vmatmul.mubr.bf16.gmra.mrb[0].mxu0 %v136
    %v214 = vpop.f32.mrb[0].mxu0
    %v215 = vadd.f32 %v68, %v214
    %v216 = vpop.f32.mrb[0].mxu0
    %v217 = vpop.f32.mrb[0].mxu0
    %v218 = vadd.f32 %v68, %v217
    %v219 = vpop.f32.mrb[0].mxu0
    %220 = vmatprep.mubr.bf16.mxu0 0
    %221 = vmatmul.mubr.bf16.gmra.mrb[0].mxu0 %v139
    %v222 = vpop.f32.mrb[0].mxu0
    %v223 = vadd.f32 %v68, %v222
    %v224 = vpop.f32.mrb[0].mxu0
    %v225 = vpop.f32.mrb[0].mxu0
    %v226 = vadd.f32 %v68, %v225
    %v227 = vpop.f32.mrb[0].mxu0
    %228 = vmatprep.mubr.bf16.mxu0 0
    %229 = vmatmul.mubr.bf16.gmra.mrb[0].mxu0 %v142
    %v230 = vpop.f32.mrb[0].mxu0
    %v231 = vadd.f32 %v68, %v230
    %v232 = vpop.f32.mrb[0].mxu0
    %v233 = vpop.f32.mrb[0].mxu0
    %v234 = vadd.f32 %v68, %v233
    %v235 = vpop.f32.mrb[0].mxu0
    %236 = vmatprep.mubr.bf16.mxu0 0
    %237 = vmatmul.mubr.bf16.gmra.mrb[0].mxu0 %v145
    %v238 = vpop.f32.mrb[0].mxu0
    %v239 = vadd.f32 %v68, %v238
    %v240 = vpop.f32.mrb[0].mxu0
    %v241 = vpop.f32.mrb[0].mxu0
    %v242 = vadd.f32 %v68, %v241
    %v243 = vpop.f32.mrb[0].mxu0
    %244 = vmatprep.mubr.bf16.mxu0 0
    %245 = vmatmul.mubr.bf16.gmra.mrb[0].mxu0 %v148
    %v246 = vpop.f32.mrb[0].mxu0
    %v247 = vadd.f32 %v68, %v246
    %v248 = vpop.f32.mrb[0].mxu0
    %v249 = vpop.f32.mrb[0].mxu0
    %v250 = vadd.f32 %v68, %v249
    %v251 = vpop.f32.mrb[0].mxu0
    %252 = vdwg.mxu0
    %v253 = vsub.f32 0.0, %v191
    %v254 = vsub.f32 0.0, %v194
    %v255 = vsub.f32 0.0, %v199
    %v256 = vsub.f32 0.0, %v202
    %v257 = vsub.f32 0.0, %v207
    %v258 = vsub.f32 0.0, %v210
    %v259 = vsub.f32 0.0, %v215
    %v260 = vsub.f32 0.0, %v218
    %v261 = vsub.f32 0.0, %v223
    %v262 = vsub.f32 0.0, %v226
    %v263 = vsub.f32 0.0, %v231
    %v264 = vsub.f32 0.0, %v234
    %v265 = vsub.f32 0.0, %v239
    %v266 = vsub.f32 0.0, %v242
    %v267 = vsub.f32 0.0, %v247
    %v268 = vsub.f32 0.0, %v250
    %v269 = vmul.f32 %v253, 1.442695
    %v270 = vpow.pop %v269
    %v271 = vmul.f32 %v254, 1.442695
    %v272 = vpow.pop %v271
    %v273 = vmul.f32 %v255, 1.442695
    %v274 = vpow.pop %v273
    %v275 = vmul.f32 %v256, 1.442695
    %v276 = vpow.pop %v275
    %v277 = vmul.f32 %v257, 1.442695
    %v278 = vpow.pop %v277
    %v279 = vmul.f32 %v258, 1.442695
    %v280 = vpow.pop %v279
    %v281 = vmul.f32 %v259, 1.442695
    %v282 = vpow.pop %v281
    %v283 = vmul.f32 %v260, 1.442695
    %v284 = vpow.pop %v283
    %v285 = vmul.f32 %v261, 1.442695
    %v286 = vpow.pop %v285
    %v287 = vmul.f32 %v262, 1.442695
    %v288 = vpow.pop %v287
    %v289 = vmul.f32 %v263, 1.442695
    %v290 = vpow.pop %v289
    %v291 = vmul.f32 %v264, 1.442695
    %v292 = vpow.pop %v291
    %v293 = vmul.f32 %v265, 1.442695
    %v294 = vpow.pop %v293
    %v295 = vmul.f32 %v266, 1.442695
    %v296 = vpow.pop %v295
    %v297 = vmul.f32 %v267, 1.442695
    %v298 = vpow.pop %v297
    %v299 = vmul.f32 %v268, 1.442695
    %v300 = vpow.pop %v299
    %v301 = vadd.f32 %v270, 1.0
    %v302 = vadd.f32 %v272, 1.0
    %v303 = vadd.f32 %v274, 1.0
    %v304 = vadd.f32 %v276, 1.0
    %v305 = vadd.f32 %v278, 1.0
    %v306 = vadd.f32 %v280, 1.0
    %v307 = vadd.f32 %v282, 1.0
    %v308 = vadd.f32 %v284, 1.0
    %v309 = vadd.f32 %v286, 1.0
    %v310 = vadd.f32 %v288, 1.0
    %v311 = vadd.f32 %v290, 1.0
    %v312 = vadd.f32 %v292, 1.0
    %v313 = vadd.f32 %v294, 1.0
    %v314 = vadd.f32 %v296, 1.0
    %v315 = vadd.f32 %v298, 1.0
    %v316 = vadd.f32 %v300, 1.0
    %v317 = vrcp.pop %v301
    %v318 = vmul.f32 %v191, %v317
    %v319 = vrcp.pop %v302
    %v320 = vmul.f32 %v194, %v319
    %v321 = vrcp.pop %v303
    %v322 = vmul.f32 %v199, %v321
    %v323 = vrcp.pop %v304
    %v324 = vmul.f32 %v202, %v323
    %v325 = vrcp.pop %v305
    %v326 = vmul.f32 %v207, %v325
    %v327 = vrcp.pop %v306
    %v328 = vmul.f32 %v210, %v327
    %v329 = vrcp.pop %v307
    %v330 = vmul.f32 %v215, %v329
    %v331 = vrcp.pop %v308
    %v332 = vmul.f32 %v218, %v331
    %v333 = vrcp.pop %v309
    %v334 = vmul.f32 %v223, %v333
    %v335 = vrcp.pop %v310
    %v336 = vmul.f32 %v226, %v335
    %v337 = vrcp.pop %v311
    %v338 = vmul.f32 %v231, %v337
    %v339 = vrcp.pop %v312
    %v340 = vmul.f32 %v234, %v339
    %v341 = vrcp.pop %v313
    %v342 = vmul.f32 %v239, %v341
    %v343 = vrcp.pop %v314
    %v344 = vmul.f32 %v242, %v343
    %v345 = vrcp.pop %v315
    %v346 = vmul.f32 %v247, %v345
    %v347 = vrcp.pop %v316
    %v348 = vmul.f32 %v250, %v347
    %v349 = vpack.c.bf16 %v320, %v318
    %v350 = vpack.c.bf16 %v324, %v322
    %v351 = vpack.c.bf16 %v328, %v326
    %v352 = vpack.c.bf16 %v332, %v330
    %v353 = vpack.c.bf16 %v336, %v334
    %v354 = vpack.c.bf16 %v340, %v338
    %v355 = vpack.c.bf16 %v344, %v342
    %v356 = vpack.c.bf16 %v348, %v346
    %v357 = vld [vmem:[%s3] sm:$0xf]
    %v358 = vld [vmem:[%s3 + $0x4] sm:$0xf]
    %v359 = vld [vmem:[%s3 + $0x8] sm:$0xf]
    %v360 = vld [vmem:[%s3 + $0xc] sm:$0xf]
    %v361 = vld [vmem:[%s3 + $0x10] sm:$0xf]
    %v362 = vld [vmem:[%s3 + $0x14] sm:$0xf]
    %v363 = vld [vmem:[%s3 + $0x18] sm:$0xf]
    %v364 = vld [vmem:[%s3 + $0x1c] sm:$0xf]
    %v365 = vld [vmem:[%s3 + $0x20] sm:$0xf]
    %v366 = vld [vmem:[%s3 + $0x24] sm:$0xf]
    %v367 = vld [vmem:[%s3 + $0x28] sm:$0xf]
    %v368 = vld [vmem:[%s3 + $0x2c] sm:$0xf]
    %v369 = vld [vmem:[%s3 + $0x30] sm:$0xf]
    %v370 = vld [vmem:[%s3 + $0x34] sm:$0xf]
    %v371 = vld [vmem:[%s3 + $0x38] sm:$0xf]
    %v372 = vld [vmem:[%s3 + $0x3c] sm:$0xf]
    %v373 = vld [vmem:[%s4] sm:$0x1]
    %v375 = vlaneseq
    %v376 = vshrl.u32 %v375, 7
    %v377 = vsub.s32 0, %v376
    %v378 = vrot.slane %v373, %v377
    %v396 = vunpack.c.l.b16 %v357
    %v397 = vunpack.c.l.b16 %v358
    %v398 = vunpack.c.l.b16 %v359
    %v399 = vunpack.c.l.b16 %v360
    %v400 = vunpack.c.l.b16 %v361
    %v401 = vunpack.c.l.b16 %v362
    %v402 = vunpack.c.l.b16 %v363
    %v403 = vunpack.c.l.b16 %v364
    %v404 = vunpack.c.l.b16 %v365
    %v405 = vunpack.c.l.b16 %v366
    %v406 = vunpack.c.l.b16 %v367
    %v407 = vunpack.c.l.b16 %v368
    %v408 = vunpack.c.l.b16 %v369
    %v409 = vunpack.c.l.b16 %v370
    %v410 = vunpack.c.l.b16 %v371
    %v411 = vunpack.c.l.b16 %v372
    %v412 = vpack.c.b16 %v397, %v396
    %v413 = vpack.c.b16 %v399, %v398
    %v414 = vpack.c.b16 %v401, %v400
    %v415 = vpack.c.b16 %v403, %v402
    %v416 = vpack.c.b16 %v405, %v404
    %v417 = vpack.c.b16 %v407, %v406
    %v418 = vpack.c.b16 %v409, %v408
    %v419 = vpack.c.b16 %v411, %v410
    %428 = vmatprep.subr.bf16.mxu0 0
    %429 = vmatpush1.bf16.msra.mxu0 %v412
    %430 = vmatprep.subr.bf16.mxu0 0
    %431 = vmatpush1.bf16.msra.mxu0 %v413
    %432 = vmatprep.subr.bf16.mxu0 0
    %433 = vmatpush1.bf16.msra.mxu0 %v414
    %434 = vmatprep.subr.bf16.mxu0 0
    %435 = vmatpush1.bf16.msra.mxu0 %v415
    %436 = vmatprep.subr.bf16.mxu0 0
    %437 = vmatpush1.bf16.msra.mxu0 %v416
    %438 = vmatprep.subr.bf16.mxu0 0
    %439 = vmatpush1.bf16.msra.mxu0 %v417
    %440 = vmatprep.subr.bf16.mxu0 0
    %441 = vmatpush1.bf16.msra.mxu0 %v418
    %442 = vmatprep.subr.bf16.mxu0 0
    %443 = vmatpush1.bf16.msra.mxu0 %v419
    %444 = vmatprep.subr.bf16.mxu0 0
    %445 = vmatpush1.bf16.msra.mxu0 0
    %446 = vmatprep.subr.bf16.mxu0 0
    %447 = vmatpush1.bf16.msra.mxu0 0
    %448 = vmatprep.subr.bf16.mxu0 0
    %449 = vmatpush1.bf16.msra.mxu0 0
    %450 = vmatprep.subr.bf16.mxu0 0
    %451 = vmatpush1.bf16.msra.mxu0 0
    %452 = vmatprep.subr.bf16.mxu0 0
    %453 = vmatpush1.bf16.msra.mxu0 0
    %454 = vmatprep.subr.bf16.mxu0 0
    %455 = vmatpush1.bf16.msra.mxu0 0
    %456 = vmatprep.subr.bf16.mxu0 0
    %457 = vmatpush1.bf16.msra.mxu0 0
    %458 = vmatprep.subr.bf16.mxu0 0
    %459 = vmatpush1.bf16.msra.mxu0 0
    %460 = vmatprep.mubr.bf16.mxu0 0
    %461 = vmatmul.mubr.bf16.gmra.mrb[0].mxu0 %v349
    %v462 = vpop.f32.mrb[0].mxu0
    %v463 = vadd.f32 %v378, %v462
    %v464 = vpop.f32.mrb[0].mxu0
    %v465 = vpop.f32.mrb[0].mxu0
    %v466 = vadd.f32 %v378, %v465
    %v467 = vpop.f32.mrb[0].mxu0
    %468 = vmatprep.mubr.bf16.mxu0 0
    %469 = vmatmul.mubr.bf16.gmra.mrb[0].mxu0 %v350
    %v470 = vpop.f32.mrb[0].mxu0
    %v471 = vadd.f32 %v378, %v470
    %v472 = vpop.f32.mrb[0].mxu0
    %v473 = vpop.f32.mrb[0].mxu0
    %v474 = vadd.f32 %v378, %v473
    %v475 = vpop.f32.mrb[0].mxu0
    %476 = vmatprep.mubr.bf16.mxu0 0
    %477 = vmatmul.mubr.bf16.gmra.mrb[0].mxu0 %v351
    %v478 = vpop.f32.mrb[0].mxu0
    %v479 = vadd.f32 %v378, %v478
    %v480 = vpop.f32.mrb[0].mxu0
    %v481 = vpop.f32.mrb[0].mxu0
    %v482 = vadd.f32 %v378, %v481
    %v483 = vpop.f32.mrb[0].mxu0
    %484 = vmatprep.mubr.bf16.mxu0 0
    %485 = vmatmul.mubr.bf16.gmra.mrb[0].mxu0 %v352
    %v486 = vpop.f32.mrb[0].mxu0
    %v487 = vadd.f32 %v378, %v486
    %v488 = vpop.f32.mrb[0].mxu0
    %v489 = vpop.f32.mrb[0].mxu0
    %v490 = vadd.f32 %v378, %v489
    %v491 = vpop.f32.mrb[0].mxu0
    %492 = vmatprep.mubr.bf16.mxu0 0
    %493 = vmatmul.mubr.bf16.gmra.mrb[0].mxu0 %v353
    %v494 = vpop.f32.mrb[0].mxu0
    %v495 = vadd.f32 %v378, %v494
    %v496 = vpop.f32.mrb[0].mxu0
    %v497 = vpop.f32.mrb[0].mxu0
    %v498 = vadd.f32 %v378, %v497
    %v499 = vpop.f32.mrb[0].mxu0
    %500 = vmatprep.mubr.bf16.mxu0 0
    %501 = vmatmul.mubr.bf16.gmra.mrb[0].mxu0 %v354
    %v502 = vpop.f32.mrb[0].mxu0
    %v503 = vadd.f32 %v378, %v502
    %v504 = vpop.f32.mrb[0].mxu0
    %v505 = vpop.f32.mrb[0].mxu0
    %v506 = vadd.f32 %v378, %v505
    %v507 = vpop.f32.mrb[0].mxu0
    %508 = vmatprep.mubr.bf16.mxu0 0
    %509 = vmatmul.mubr.bf16.gmra.mrb[0].mxu0 %v355
    %v510 = vpop.f32.mrb[0].mxu0
    %v511 = vadd.f32 %v378, %v510
    %v512 = vpop.f32.mrb[0].mxu0
    %v513 = vpop.f32.mrb[0].mxu0
    %v514 = vadd.f32 %v378, %v513
    %v515 = vpop.f32.mrb[0].mxu0
    %516 = vmatprep.mubr.bf16.mxu0 0
    %517 = vmatmul.mubr.bf16.gmra.mrb[0].mxu0 %v356
    %v518 = vpop.f32.mrb[0].mxu0
    %v519 = vadd.f32 %v378, %v518
    %v520 = vpop.f32.mrb[0].mxu0
    %v521 = vpop.f32.mrb[0].mxu0
    %v522 = vadd.f32 %v378, %v521
    %v523 = vpop.f32.mrb[0].mxu0
    %524 = vdwg.mxu0
    %v525 = vsub.f32 0.0, %v463
    %v526 = vsub.f32 0.0, %v466
    %v527 = vsub.f32 0.0, %v471
    %v528 = vsub.f32 0.0, %v474
    %v529 = vsub.f32 0.0, %v479
    %v530 = vsub.f32 0.0, %v482
    %v531 = vsub.f32 0.0, %v487
    %v532 = vsub.f32 0.0, %v490
    %v533 = vsub.f32 0.0, %v495
    %v534 = vsub.f32 0.0, %v498
    %v535 = vsub.f32 0.0, %v503
    %v536 = vsub.f32 0.0, %v506
    %v537 = vsub.f32 0.0, %v511
    %v538 = vsub.f32 0.0, %v514
    %v539 = vsub.f32 0.0, %v519
    %v540 = vsub.f32 0.0, %v522
    %v541 = vmul.f32 %v525, 1.442695
    %v542 = vpow.pop %v541
    %v543 = vmul.f32 %v526, 1.442695
    %v544 = vpow.pop %v543
    %v545 = vmul.f32 %v527, 1.442695
    %v546 = vpow.pop %v545
    %v547 = vmul.f32 %v528, 1.442695
    %v548 = vpow.pop %v547
    %v549 = vmul.f32 %v529, 1.442695
    %v550 = vpow.pop %v549
    %v551 = vmul.f32 %v530, 1.442695
    %v552 = vpow.pop %v551
    %v553 = vmul.f32 %v531, 1.442695
    %v554 = vpow.pop %v553
    %v555 = vmul.f32 %v532, 1.442695
    %v556 = vpow.pop %v555
    %v557 = vmul.f32 %v533, 1.442695
    %v558 = vpow.pop %v557
    %v559 = vmul.f32 %v534, 1.442695
    %v560 = vpow.pop %v559
    %v561 = vmul.f32 %v535, 1.442695
    %v562 = vpow.pop %v561
    %v563 = vmul.f32 %v536, 1.442695
    %v564 = vpow.pop %v563
    %v565 = vmul.f32 %v537, 1.442695
    %v566 = vpow.pop %v565
    %v567 = vmul.f32 %v538, 1.442695
    %v568 = vpow.pop %v567
    %v569 = vmul.f32 %v539, 1.442695
    %v570 = vpow.pop %v569
    %v571 = vmul.f32 %v540, 1.442695
    %v572 = vpow.pop %v571
    %v573 = vadd.f32 %v542, 1.0
    %v574 = vadd.f32 %v544, 1.0
    %v575 = vadd.f32 %v546, 1.0
    %v576 = vadd.f32 %v548, 1.0
    %v577 = vadd.f32 %v550, 1.0
    %v578 = vadd.f32 %v552, 1.0
    %v579 = vadd.f32 %v554, 1.0
    %v580 = vadd.f32 %v556, 1.0
    %v581 = vadd.f32 %v558, 1.0
    %v582 = vadd.f32 %v560, 1.0
    %v583 = vadd.f32 %v562, 1.0
    %v584 = vadd.f32 %v564, 1.0
    %v585 = vadd.f32 %v566, 1.0
    %v586 = vadd.f32 %v568, 1.0
    %v587 = vadd.f32 %v570, 1.0
    %v588 = vadd.f32 %v572, 1.0
    %v589 = vrcp.pop %v573
    %v590 = vmul.f32 %v463, %v589
    %v591 = vrcp.pop %v574
    %v592 = vmul.f32 %v466, %v591
    %v593 = vrcp.pop %v575
    %v594 = vmul.f32 %v471, %v593
    %v595 = vrcp.pop %v576
    %v596 = vmul.f32 %v474, %v595
    %v597 = vrcp.pop %v577
    %v598 = vmul.f32 %v479, %v597
    %v599 = vrcp.pop %v578
    %v600 = vmul.f32 %v482, %v599
    %v601 = vrcp.pop %v579
    %v602 = vmul.f32 %v487, %v601
    %v603 = vrcp.pop %v580
    %v604 = vmul.f32 %v490, %v603
    %v605 = vrcp.pop %v581
    %v606 = vmul.f32 %v495, %v605
    %v607 = vrcp.pop %v582
    %v608 = vmul.f32 %v498, %v607
    %v609 = vrcp.pop %v583
    %v610 = vmul.f32 %v503, %v609
    %v611 = vrcp.pop %v584
    %v612 = vmul.f32 %v506, %v611
    %v613 = vrcp.pop %v585
    %v614 = vmul.f32 %v511, %v613
    %v615 = vrcp.pop %v586
    %v616 = vmul.f32 %v514, %v615
    %v617 = vrcp.pop %v587
    %v618 = vmul.f32 %v519, %v617
    %v619 = vrcp.pop %v588
    %v620 = vmul.f32 %v522, %v619
    %v621 = vpack.c.bf16 %v592, %v590
    %v622 = vpack.c.bf16 %v596, %v594
    %v623 = vpack.c.bf16 %v600, %v598
    %v624 = vpack.c.bf16 %v604, %v602
    %v625 = vpack.c.bf16 %v608, %v606
    %v626 = vpack.c.bf16 %v612, %v610
    %v627 = vpack.c.bf16 %v616, %v614
    %v628 = vpack.c.bf16 %v620, %v618
    %v629 = vld [vmem:[#allocation2] sm:$0xf]
    %v630 = vld [vmem:[#allocation2 + $0x4] sm:$0xf]
    %v631 = vld [vmem:[#allocation2 + $0x8] sm:$0xf]
    %v632 = vld [vmem:[#allocation2 + $0xc] sm:$0xf]
    %v633 = vld [vmem:[#allocation2 + $0x10] sm:$0xf]
    %v634 = vld [vmem:[#allocation2 + $0x14] sm:$0xf]
    %v635 = vld [vmem:[#allocation2 + $0x18] sm:$0xf]
    %v636 = vld [vmem:[#allocation2 + $0x1c] sm:$0xf]
    %v637 = vld [vmem:[#allocation2 + $0x20] sm:$0xf]
    %v638 = vld [vmem:[#allocation2 + $0x24] sm:$0xf]
    %v639 = vld [vmem:[#allocation2 + $0x28] sm:$0xf]
    %v640 = vld [vmem:[#allocation2 + $0x2c] sm:$0xf]
    %v641 = vld [vmem:[#allocation2 + $0x30] sm:$0xf]
    %v642 = vld [vmem:[#allocation2 + $0x34] sm:$0xf]
    %v643 = vld [vmem:[#allocation2 + $0x38] sm:$0xf]
    %v644 = vld [vmem:[#allocation2 + $0x3c] sm:$0xf]
    %v645 = vld [vmem:[%s6] sm:$0x1]
    %v647 = vlaneseq
    %v648 = vshrl.u32 %v647, 7
    %v649 = vsub.s32 0, %v648
    %v650 = vrot.slane %v645, %v649
    %v668 = vunpack.c.l.b16 %v629
    %v669 = vunpack.c.l.b16 %v630
    %v670 = vunpack.c.l.b16 %v631
    %v671 = vunpack.c.l.b16 %v632
    %v672 = vunpack.c.l.b16 %v633
    %v673 = vunpack.c.l.b16 %v634
    %v674 = vunpack.c.l.b16 %v635
    %v675 = vunpack.c.l.b16 %v636
    %v676 = vunpack.c.l.b16 %v637
    %v677 = vunpack.c.l.b16 %v638
    %v678 = vunpack.c.l.b16 %v639
    %v679 = vunpack.c.l.b16 %v640
    %v680 = vunpack.c.l.b16 %v641
    %v681 = vunpack.c.l.b16 %v642
    %v682 = vunpack.c.l.b16 %v643
    %v683 = vunpack.c.l.b16 %v644
    %v684 = vpack.c.b16 %v669, %v668
    %v685 = vpack.c.b16 %v671, %v670
    %v686 = vpack.c.b16 %v673, %v672
    %v687 = vpack.c.b16 %v675, %v674
    %v688 = vpack.c.b16 %v677, %v676
    %v689 = vpack.c.b16 %v679, %v678
    %v690 = vpack.c.b16 %v681, %v680
    %v691 = vpack.c.b16 %v683, %v682
    %700 = vmatprep.subr.bf16.mxu0 0
    %701 = vmatpush1.bf16.msra.mxu0 %v684
    %702 = vmatprep.subr.bf16.mxu0 0
    %703 = vmatpush1.bf16.msra.mxu0 %v685
    %704 = vmatprep.subr.bf16.mxu0 0
    %705 = vmatpush1.bf16.msra.mxu0 %v686
    %706 = vmatprep.subr.bf16.mxu0 0
    %707 = vmatpush1.bf16.msra.mxu0 %v687
    %708 = vmatprep.subr.bf16.mxu0 0
    %709 = vmatpush1.bf16.msra.mxu0 %v688
    %710 = vmatprep.subr.bf16.mxu0 0
    %711 = vmatpush1.bf16.msra.mxu0 %v689
    %712 = vmatprep.subr.bf16.mxu0 0
    %713 = vmatpush1.bf16.msra.mxu0 %v690
    %714 = vmatprep.subr.bf16.mxu0 0
    %715 = vmatpush1.bf16.msra.mxu0 %v691
    %716 = vmatprep.subr.bf16.mxu0 0
    %717 = vmatpush1.bf16.msra.mxu0 0
    %718 = vmatprep.subr.bf16.mxu0 0
    %719 = vmatpush1.bf16.msra.mxu0 0
    %720 = vmatprep.subr.bf16.mxu0 0
    %721 = vmatpush1.bf16.msra.mxu0 0
    %722 = vmatprep.subr.bf16.mxu0 0
    %723 = vmatpush1.bf16.msra.mxu0 0
    %724 = vmatprep.subr.bf16.mxu0 0
    %725 = vmatpush1.bf16.msra.mxu0 0
    %726 = vmatprep.subr.bf16.mxu0 0
    %727 = vmatpush1.bf16.msra.mxu0 0
    %728 = vmatprep.subr.bf16.mxu0 0
    %729 = vmatpush1.bf16.msra.mxu0 0
    %730 = vmatprep.subr.bf16.mxu0 0
    %731 = vmatpush1.bf16.msra.mxu0 0
    %732 = vmatprep.mubr.bf16.mxu0 0
    %733 = vmatmul.mubr.bf16.gmra.mrb[0].mxu0 %v621
    %v734 = vpop.f32.mrb[0].mxu0
    %v735 = vadd.f32 %v650, %v734
    %v736 = vpop.f32.mrb[0].mxu0
    %v737 = vpop.f32.mrb[0].mxu0
    %v738 = vadd.f32 %v650, %v737
    %v739 = vpop.f32.mrb[0].mxu0
    %740 = vmatprep.mubr.bf16.mxu0 0
    %741 = vmatmul.mubr.bf16.gmra.mrb[0].mxu0 %v622
    %v742 = vpop.f32.mrb[0].mxu0
    %v743 = vadd.f32 %v650, %v742
    %v744 = vpop.f32.mrb[0].mxu0
    %v745 = vpop.f32.mrb[0].mxu0
    %v746 = vadd.f32 %v650, %v745
    %v747 = vpop.f32.mrb[0].mxu0
    %748 = vmatprep.mubr.bf16.mxu0 0
    %749 = vmatmul.mubr.bf16.gmra.mrb[0].mxu0 %v623
    %v750 = vpop.f32.mrb[0].mxu0
    %v751 = vadd.f32 %v650, %v750
    %v752 = vpop.f32.mrb[0].mxu0
    %v753 = vpop.f32.mrb[0].mxu0
    %v754 = vadd.f32 %v650, %v753
    %v755 = vpop.f32.mrb[0].mxu0
    %756 = vmatprep.mubr.bf16.mxu0 0
    %757 = vmatmul.mubr.bf16.gmra.mrb[0].mxu0 %v624
    %v758 = vpop.f32.mrb[0].mxu0
    %v759 = vadd.f32 %v650, %v758
    %v760 = vpop.f32.mrb[0].mxu0
    %v761 = vpop.f32.mrb[0].mxu0
    %v762 = vadd.f32 %v650, %v761
    %v763 = vpop.f32.mrb[0].mxu0
    %764 = vmatprep.mubr.bf16.mxu0 0
    %765 = vmatmul.mubr.bf16.gmra.mrb[0].mxu0 %v625
    %v766 = vpop.f32.mrb[0].mxu0
    %v767 = vadd.f32 %v650, %v766
    %v768 = vpop.f32.mrb[0].mxu0
    %v769 = vpop.f32.mrb[0].mxu0
    %v770 = vadd.f32 %v650, %v769
    %v771 = vpop.f32.mrb[0].mxu0
    %772 = vmatprep.mubr.bf16.mxu0 0
    %773 = vmatmul.mubr.bf16.gmra.mrb[0].mxu0 %v626
    %v774 = vpop.f32.mrb[0].mxu0
    %v775 = vadd.f32 %v650, %v774
    %v776 = vpop.f32.mrb[0].mxu0
    %v777 = vpop.f32.mrb[0].mxu0
    %v778 = vadd.f32 %v650, %v777
    %v779 = vpop.f32.mrb[0].mxu0
    %780 = vmatprep.mubr.bf16.mxu0 0
    %781 = vmatmul.mubr.bf16.gmra.mrb[0].mxu0 %v627
    %v782 = vpop.f32.mrb[0].mxu0
    %v783 = vadd.f32 %v650, %v782
    %v784 = vpop.f32.mrb[0].mxu0
    %v785 = vpop.f32.mrb[0].mxu0
    %v786 = vadd.f32 %v650, %v785
    %v787 = vpop.f32.mrb[0].mxu0
    %788 = vmatprep.mubr.bf16.mxu0 0
    %789 = vmatmul.mubr.bf16.gmra.mrb[0].mxu0 %v628
    %v790 = vpop.f32.mrb[0].mxu0
    %v791 = vadd.f32 %v650, %v790
    %v792 = vpop.f32.mrb[0].mxu0
    %v793 = vpop.f32.mrb[0].mxu0
    %v794 = vadd.f32 %v650, %v793
    %v795 = vpop.f32.mrb[0].mxu0
    %796 = vdwg.mxu0
    %797 = vst [vmem:[#allocation5] sm:$0xff] %v735
    %798 = vst [vmem:[#allocation5 + $0x8] sm:$0xff] %v738
    %799 = vst [vmem:[#allocation5 + $0x10] sm:$0xff] %v743
    %800 = vst [vmem:[#allocation5 + $0x18] sm:$0xff] %v746
    %801 = vst [vmem:[#allocation5 + $0x20] sm:$0xff] %v751
    %802 = vst [vmem:[#allocation5 + $0x28] sm:$0xff] %v754
    %803 = vst [vmem:[#allocation5 + $0x30] sm:$0xff] %v759
    %804 = vst [vmem:[#allocation5 + $0x38] sm:$0xff] %v762
    %805 = vst [vmem:[#allocation5 + $0x40] sm:$0xff] %v767
    %806 = vst [vmem:[#allocation5 + $0x48] sm:$0xff] %v770
    %807 = vst [vmem:[#allocation5 + $0x50] sm:$0xff] %v775
    %808 = vst [vmem:[#allocation5 + $0x58] sm:$0xff] %v778
    %809 = vst [vmem:[#allocation5 + $0x60] sm:$0xff] %v783
    %810 = vst [vmem:[#allocation5 + $0x68] sm:$0xff] %v786
    %811 = vst [vmem:[#allocation5 + $0x70] sm:$0xff] %v791
    %812 = vst [vmem:[#allocation5 + $0x78] sm:$0xff] %v794
    // Predicated region
    $region34: #{tpu_custom_call.1} parent=1 // pred_check
      _
    $region35: #{tpu_custom_call.1} parent=1 // pred_check_branch
      %814 = sbr.rel (0) target = $region37
    $region36: #{tpu_custom_call.1} parent=1 // pred_region
      %s816 = ssub.s32 2048, 2048
      %817 = vsyncadd [#allocation4], %s816
      %s818 = sshll.u32 [#allocation5], 4
      %s819 = int_to_ptr.vmem [resolvable:$true] %s818
      %824 = dma.vmem_to_hbm [thread:$0]  %s819, 2048, %s7, [#allocation4], 128, 128, 8
    $region37: #{tpu_custom_call.1} parent=1 // pred_fallthru
      _
    // Predicated region
    $region38: #{tpu_custom_call.1} parent=1 // pred_check
      _
    $region39: #{tpu_custom_call.1} parent=1 // pred_check_branch
      %826 = sbr.rel (0) target = $region41
    $region40: #{tpu_custom_call.1} parent=1 // pred_region
      %827 = dma.done [#allocation4], 2048
    $region41: #{tpu_custom_call.1} parent=1 // pred_fallthru
      _
    %828 = vsyncpa [#allocation3], 1
    %829 = vsyncpa [#allocation4], 1

</llo_original>
